<compile_context>
chip_gen: v7x
topology: tpu7x:2x2x1
jax: 0.10.0
libtpu: 0.0.40
codegen_flags: <defaults>
</compile_context>

<pallas_src>
import functools
import math

import jax
import jax.numpy as jnp
from jax import lax
from jax.experimental import pallas as pl
from jax.experimental.pallas import tpu as pltpu

LN_EPS = 1e-5  # torch.nn.LayerNorm default


# ----------------------------------------------------------------------------
# Kernel 1: fused input Linear + LayerNorm + ReLU  (fcs[0] -> bns[0] -> relu)
# Tiled over node rows; weight/bias/LN params VMEM-resident.
# ----------------------------------------------------------------------------
def _fc_ln_relu_kernel(x_ref, w_ref, b_ref, g_ref, beta_ref, o_ref):
    h = jnp.dot(x_ref[...].astype(jnp.bfloat16), w_ref[...],
                preferred_element_type=jnp.float32) + b_ref[...]
    mu = jnp.mean(h, axis=-1, keepdims=True)
    var = jnp.mean(jnp.square(h - mu), axis=-1, keepdims=True)
    hn = (h - mu) * lax.rsqrt(var + LN_EPS) * g_ref[...] + beta_ref[...]
    o_ref[...] = jnp.maximum(hn, 0.0).astype(o_ref.dtype)


def fc_ln_relu(x, w, b, gamma, beta, *, tm=128):
    n, cin = x.shape
    c = w.shape[1]
    tm = min(tm, n)
    assert n % tm == 0 and (tm % 8 == 0 or tm == n), "pad N to a multiple of the tile"
    const = lambda i: (0, 0)
    return pl.pallas_call(
        _fc_ln_relu_kernel,
        grid=(n // tm,),
        in_specs=[pl.BlockSpec((tm, cin), lambda i: (i, 0)),   # x row block
                  pl.BlockSpec((cin, c), const),               # W  (bf16, resident)
                  pl.BlockSpec((1, c), const),                 # bias
                  pl.BlockSpec((1, c), const),                 # LN gamma
                  pl.BlockSpec((1, c), const)],                # LN beta
        out_specs=pl.BlockSpec((tm, c), lambda i: (i, 0)),
        out_shape=jax.ShapeDtypeStruct((n, c), jnp.float32),
        compiler_params=pltpu.CompilerParams(dimension_semantics=("parallel",)),
    )(x, w, b.reshape(1, c), gamma.reshape(1, c), beta.reshape(1, c))


# ----------------------------------------------------------------------------
# Kernel 2: one full TransConvLayer (projections + GAT attention + head mean +
# residual + LayerNorm), tiled over (query rows, key rows).
# ----------------------------------------------------------------------------
def _trans_conv_layer_kernel(xq_ref, xk_ref,
                             wq_ref, bq_ref,          # GATAttention.Wq
                             wkv_ref, bkv_ref,        # [GATAttention.Wk | TransConvLayerGAT.Wv]
                             wvg_ref, bvg_ref,        # GATAttention.Wv
                             g_ref, beta_ref,         # LayerNorm of this layer
                             o_ref,
                             q_scr, u_scr, rs_scr,
                             *, num_heads, dk, hidden, alpha):
    j = pl.program_id(1)
    qdim = num_heads * dk
    inv_sqrt_dk = 1.0 / math.sqrt(float(dk))

    # ---- per query-block init (first key block): project q once, zero accums.
    @pl.when(j == 0)
    def _init():
        q = jnp.dot(xq_ref[...].astype(jnp.bfloat16), wq_ref[...],
                    preferred_element_type=jnp.float32) + bq_ref[...]
        q_scr[...] = (q * inv_sqrt_dk).astype(jnp.bfloat16)   # fold 1/sqrt(dk) into q
        u_scr[...] = jnp.zeros_like(u_scr)
        rs_scr[...] = jnp.zeros_like(rs_scr)

    # ---- key/value projections for this key block: one fused matmul [Wk|Wv_layer]
    kv = jnp.dot(xk_ref[...].astype(jnp.bfloat16), wkv_ref[...],
                 preferred_element_type=jnp.float32) + bkv_ref[...]
    k_bf = kv[:, :qdim].astype(jnp.bfloat16)
    v0_bf = kv[:, qdim:].astype(jnp.bfloat16)
    q_bf = q_scr[...]

    # ---- per-head scores [TM, TL]: contract dim 1 of both operands (no k transpose)
    dnums = (((1,), (1,)), ((), ()))
    scores = [lax.dot_general(q_bf[:, h * dk:(h + 1) * dk],
                              k_bf[:, h * dk:(h + 1) * dk],
                              dnums, preferred_element_type=jnp.float32)
              for h in range(num_heads)]

    # ---- softmax over the HEAD axis (torch softmax(dim=-1) of [N,L,H]); it is
    #      local to each (n,l) pair, so no cross-key-block online softmax needed.
    m = scores[0]
    for h in range(1, num_heads):
        m = jnp.maximum(m, scores[h])
    denom = None
    for h in range(num_heads):
        scores[h] = jnp.exp(scores[h] - m)        # overwrite in place: bound live tiles
        denom = scores[h] if denom is None else denom + scores[h]
    inv_denom = pl.reciprocal(denom, approx=True)
    if num_heads > 1:                             # fold the head-mean into the weights
        inv_denom = inv_denom * (1.0 / float(num_heads))

    # ---- accumulate u_h += attn_h @ v0 and rowsum_h += sum_l attn_h.
    #      The Wv_gat projection is deferred to the last key block, so the
    #      [TL, heads*hidden] value tensor is never materialized.
    for h in range(num_heads):
        attn_h = scores[h] * inv_denom
        rs_scr[:, h:h + 1] += jnp.sum(attn_h, axis=1, keepdims=True)
        u_scr[:, h * hidden:(h + 1) * hidden] += jnp.dot(
            attn_h.astype(jnp.bfloat16), v0_bf, preferred_element_type=jnp.float32)

    # ---- finalize at the last key block: Wv_gat, head mean, residual, LayerNorm.
    @pl.when(j == pl.num_programs(1) - 1)
    def _finalize():
        attn_out = jnp.zeros(o_ref.shape, jnp.float32)
        for h in range(num_heads):
            u_h = u_scr[:, h * hidden:(h + 1) * hidden].astype(jnp.bfloat16)
            z = jnp.dot(u_h, wvg_ref[:, h * hidden:(h + 1) * hidden],
                        preferred_element_type=jnp.float32)
            z = z + rs_scr[:, h:h + 1] * bvg_ref[:, h * hidden:(h + 1) * hidden]
            attn_out = attn_out + z
        # Residual: layer_[i] is exactly the x fed into this conv layer.
        y = alpha * attn_out + (1.0 - alpha) * xq_ref[...]
        mu = jnp.mean(y, axis=-1, keepdims=True)
        var = jnp.mean(jnp.square(y - mu), axis=-1, keepdims=True)
        o_ref[...] = ((y - mu) * lax.rsqrt(var + LN_EPS) * g_ref[...]
                      + beta_ref[...]).astype(o_ref.dtype)


def trans_conv_layer(x, p, *, num_heads, alpha, tm=128, tl=128):
    n, hid = x.shape
    dk = hid // num_heads
    qdim = num_heads * dk
    tm = min(tm, n)
    tl = min(tl, n)
    assert n % tm == 0 and n % tl == 0, "pad N to a multiple of the tile sizes"
    assert (tm % 8 == 0 or tm == n) and (tl % 8 == 0 or tl == n)

    kernel = functools.partial(_trans_conv_layer_kernel, num_heads=num_heads,
                               dk=dk, hidden=hid, alpha=alpha)
    const = lambda i, j: (0, 0)

    return pl.pallas_call(
        kernel,
        grid=(n // tm, n // tl),
        in_specs=[
            pl.BlockSpec((tm, hid), lambda i, j: (i, 0)),          # x: query rows
            pl.BlockSpec((tl, hid), lambda i, j: (j, 0)),          # x: key rows
            pl.BlockSpec((hid, qdim), const),                      # Wq (bf16, resident)
            pl.BlockSpec((1, qdim), const),                        # bq
            pl.BlockSpec((hid, qdim + hid), const),                # [Wk | Wv_layer] (bf16)
            pl.BlockSpec((1, qdim + hid), const),                  # [bk | bv_layer]
            pl.BlockSpec((hid, num_heads * hid), const),           # GATAttention.Wv (bf16)
            pl.BlockSpec((1, num_heads * hid), const),             # its bias
            pl.BlockSpec((1, hid), const),                         # LN gamma
            pl.BlockSpec((1, hid), const),                         # LN beta
        ],
        out_specs=pl.BlockSpec((tm, hid), lambda i, j: (i, 0)),
        out_shape=jax.ShapeDtypeStruct((n, hid), jnp.float32),
        scratch_shapes=[
            pltpu.VMEM((tm, qdim), jnp.bfloat16),                  # q (pre-scaled)
            pltpu.VMEM((tm, num_heads * hid), jnp.float32),        # sum_l attn_h @ v0
            pltpu.VMEM((tm, num_heads), jnp.float32),              # sum_l attn_h (for bias)
        ],
        compiler_params=pltpu.CompilerParams(
            dimension_semantics=("parallel", "arbitrary")),
    )(x, x, p["wq"], p["bq"].reshape(1, qdim),
      p["wkv"], p["bkv"].reshape(1, qdim + hid),
      p["wvg"], p["bvg"].reshape(1, num_heads * hid),
      p["ln_gamma"].reshape(1, hid), p["ln_beta"].reshape(1, hid))


# ----------------------------------------------------------------------------
# Parameter construction (deterministic, PyTorch-Linear-style uniform init).
# Matmul weights are stored in bf16; biases / LN params stay f32.
# ----------------------------------------------------------------------------
def _linear_params(key, fan_in, fan_out):
    kw, kb = jax.random.split(key)
    bound = 1.0 / math.sqrt(fan_in)
    w = jax.random.uniform(kw, (fan_in, fan_out), jnp.float32, -bound, bound)
    b = jax.random.uniform(kb, (fan_out,), jnp.float32, -bound, bound)
    return w, b


def init_trans_conv_params(key, in_channels, hidden, num_layers, num_heads):
    keys = jax.random.split(key, 1 + num_layers)
    w0, b0 = _linear_params(keys[0], in_channels, hidden)
    params = {
        "fc0_w": w0.astype(jnp.bfloat16), "fc0_b": b0,
        "bn0_gamma": jnp.ones((hidden,), jnp.float32),
        "bn0_beta": jnp.zeros((hidden,), jnp.float32),
        "layers": [],
    }
    dk = hidden // num_heads
    qdim = num_heads * dk
    for i in range(num_layers):
        lk = jax.random.split(keys[1 + i], 4)
        wvl, bvl = _linear_params(lk[0], hidden, hidden)               # TransConvLayerGAT.Wv
        wq, bq = _linear_params(lk[1], hidden, qdim)                   # GATAttention.Wq
        wk, bk = _linear_params(lk[2], hidden, qdim)                   # GATAttention.Wk
        wvg, bvg = _linear_params(lk[3], hidden, num_heads * hidden)   # GATAttention.Wv
        params["layers"].append({
            "wq": wq.astype(jnp.bfloat16), "bq": bq,
            "wkv": jnp.concatenate([wk, wvl], axis=1).astype(jnp.bfloat16),
            "bkv": jnp.concatenate([bk, bvl], axis=0),
            "wvg": wvg.astype(jnp.bfloat16), "bvg": bvg,
            "ln_gamma": jnp.ones((hidden,), jnp.float32),
            "ln_beta": jnp.zeros((hidden,), jnp.float32),
        })
    return params


def trans_conv_forward(x, params, *, num_heads=1, alpha=0.5, tm=128, tl=128):
    # fcs[0] -> bns[0] -> relu -> (dropout == identity)
    h = fc_ln_relu(x, params["fc0_w"], params["fc0_b"],
                   params["bn0_gamma"], params["bn0_beta"], tm=tm)
    for layer_p in params["layers"]:
        h = trans_conv_layer(h, layer_p, num_heads=num_heads, alpha=alpha, tm=tm, tl=tl)
    return h


# ----------------------------------------------------------------------------
# Pure-JAX f32 reference (uses the same bf16-quantized weights) for validation.
# ----------------------------------------------------------------------------
def reference_forward(x, params, *, num_heads=1, alpha=0.5):
    f32 = jnp.float32

    def ln(v, g, b):
        mu = jnp.mean(v, axis=-1, keepdims=True)
        var = jnp.mean(jnp.square(v - mu), axis=-1, keepdims=True)
        return (v - mu) * lax.rsqrt(var + LN_EPS) * g + b

    h = x @ params["fc0_w"].astype(f32) + params["fc0_b"]
    h = jnp.maximum(ln(h, params["bn0_gamma"], params["bn0_beta"]), 0.0)
    for p in params["layers"]:
        n, hid = h.shape
        dk = hid // num_heads
        qdim = num_heads * dk
        wq, wkv, wvg = (p["wq"].astype(f32), p["wkv"].astype(f32), p["wvg"].astype(f32))
        wk, wvl = wkv[:, :qdim], wkv[:, qdim:]
        bk, bvl = p["bkv"][:qdim], p["bkv"][qdim:]
        v0 = h @ wvl + bvl
        q = (h @ wq + p["bq"]).reshape(n, num_heads, dk)
        k = (h @ wk + bk).reshape(n, num_heads, dk)
        v = (v0 @ wvg + p["bvg"]).reshape(n, num_heads, hid)
        s = jnp.einsum("nhm,lhm->nlh", q, k) / math.sqrt(float(dk))
        a = jax.nn.softmax(s, axis=-1)                     # softmax over HEAD axis
        attn_out = jnp.einsum("nlh,lhd->nhd", a, v).mean(axis=1)
        h = ln(alpha * attn_out + (1.0 - alpha) * h, p["ln_gamma"], p["ln_beta"])
    return h


if __name__ == "__main__":
    key = jax.random.PRNGKey(0)
    k_param, k_x = jax.random.split(key)

    N = 256               # number of graph nodes
    IN_CHANNELS = 64
    HIDDEN = 128          # multiple of 128 -> lane-dense outputs
    NUM_LAYERS = 2
    NUM_HEADS = 1         # TransConv default
    ALPHA = 0.5
    TM = TL = 128         # -> grid (2, 2) per conv layer; sweep upward for large graphs

    params = init_trans_conv_params(k_param, IN_CHANNELS, HIDDEN, NUM_LAYERS, NUM_HEADS)
    x = jax.random.normal(k_x, (N, IN_CHANNELS), jnp.float32)

    out = trans_conv_forward(x, params, num_heads=NUM_HEADS, alpha=ALPHA, tm=TM, tl=TL)
    jax.block_until_ready(out)
    assert out.shape == (N, HIDDEN) and out.dtype == jnp.float32
    assert bool(jnp.all(jnp.isfinite(out)))

    # Loose tolerance: kernel uses bf16 MXU operands + approx reciprocal; the
    # unnormalized head-softmax sums over all 256 nodes before LayerNorm.
    ref = reference_forward(x, params, num_heads=NUM_HEADS, alpha=ALPHA)
    max_err = float(jnp.max(jnp.abs(out - ref)))
    assert max_err < 0.25, f"kernel deviates from f32 reference: max abs err={max_err}"

    print("KERNEL_OK")
</pallas_src>

<mosaic_0001>
module attributes {stable_mosaic.version = 11 : i64} {
  func.func @_fc_ln_relu_kernel(%arg0: i32, %arg1: memref<128x64xf32, #tpu.memory_space<vmem>>, %arg2: memref<64x128xbf16, #tpu.memory_space<vmem>>, %arg3: memref<1x128xf32, #tpu.memory_space<vmem>>, %arg4: memref<1x128xf32, #tpu.memory_space<vmem>>, %arg5: memref<1x128xf32, #tpu.memory_space<vmem>>, %arg6: memref<128x128xf32, #tpu.memory_space<vmem>>) attributes {dimension_semantics = [#tpu.dimension_semantics<parallel>], iteration_bounds = array<i64: 2>, scalar_prefetch = 0 : i64, scratch_operands = 0 : i64, tpu.core_type = #tpu.core_type<tc>, window_params = [{transform_indices = @transform_0, window_bounds = array<i64: 128, 64>}, {pipeline_mode = #tpu.pipeline_mode<synchronous>, transform_indices = @transform_1, window_bounds = array<i64: 64, 128>}, {pipeline_mode = #tpu.pipeline_mode<synchronous>, transform_indices = @transform_2, window_bounds = array<i64: 1, 128>}, {pipeline_mode = #tpu.pipeline_mode<synchronous>, transform_indices = @transform_3, window_bounds = array<i64: 1, 128>}, {pipeline_mode = #tpu.pipeline_mode<synchronous>, transform_indices = @transform_4, window_bounds = array<i64: 1, 128>}, {transform_indices = @transform_5, window_bounds = array<i64: 128, 128>}]} {
    %c0 = arith.constant 0 : index
    %c0_0 = arith.constant 0 : index
    %0 = vector.load %arg1[%c0, %c0_0] : memref<128x64xf32, #tpu.memory_space<vmem>>, vector<128x64xf32>
    %1 = arith.truncf %0 : vector<128x64xf32> to vector<128x64xbf16>
    %c0_1 = arith.constant 0 : index
    %c0_2 = arith.constant 0 : index
    %2 = vector.load %arg2[%c0_1, %c0_2] : memref<64x128xbf16, #tpu.memory_space<vmem>>, vector<64x128xbf16>
    %cst = arith.constant dense<0.000000e+00> : vector<128x128xf32>
    %3 = tpu.matmul %1, %2, %cst {dimension_numbers = #tpu.dot_dimension_numbers<[1], [0], [0], [1], [0, 0, 1, 1], [], []>} : vector<128x64xbf16>, vector<64x128xbf16>, vector<128x128xf32> -> vector<128x128xf32>
    %c0_3 = arith.constant 0 : index
    %c0_4 = arith.constant 0 : index
    %4 = vector.load %arg3[%c0_3, %c0_4] : memref<1x128xf32, #tpu.memory_space<vmem>>, vector<1x128xf32>
    %5 = vector.broadcast %4 : vector<1x128xf32> to vector<128x128xf32>
    %6 = arith.addf %3, %5 : vector<128x128xf32>
    %cst_5 = arith.constant dense<0.000000e+00> : vector<128xf32>
    %7 = vector.multi_reduction <add>, %6, %cst_5 [1] : vector<128x128xf32> to vector<128xf32>
    %8 = vector.shape_cast %7 : vector<128xf32> to vector<128x1xf32>
    %cst_6 = arith.constant 1.280000e+02 : f32
    %9 = vector.broadcast %cst_6 : f32 to vector<128x1xf32>
    %10 = arith.divf %8, %9 : vector<128x1xf32>
    %11 = vector.broadcast %10 : vector<128x1xf32> to vector<128x128xf32>
    %12 = arith.subf %6, %11 : vector<128x128xf32>
    %13 = arith.mulf %12, %12 : vector<128x128xf32>
    %cst_7 = arith.constant dense<0.000000e+00> : vector<128xf32>
    %14 = vector.multi_reduction <add>, %13, %cst_7 [1] : vector<128x128xf32> to vector<128xf32>
    %15 = vector.shape_cast %14 : vector<128xf32> to vector<128x1xf32>
    %cst_8 = arith.constant 1.280000e+02 : f32
    %16 = vector.broadcast %cst_8 : f32 to vector<128x1xf32>
    %17 = arith.divf %15, %16 : vector<128x1xf32>
    %18 = vector.broadcast %10 : vector<128x1xf32> to vector<128x128xf32>
    %19 = arith.subf %6, %18 : vector<128x128xf32>
    %cst_9 = arith.constant 9.99999974E-6 : f32
    %20 = vector.broadcast %cst_9 : f32 to vector<128x1xf32>
    %21 = arith.addf %17, %20 : vector<128x1xf32>
    %22 = math.rsqrt %21 : vector<128x1xf32>
    %23 = vector.broadcast %22 : vector<128x1xf32> to vector<128x128xf32>
    %24 = arith.mulf %19, %23 : vector<128x128xf32>
    %c0_10 = arith.constant 0 : index
    %c0_11 = arith.constant 0 : index
    %25 = vector.load %arg4[%c0_10, %c0_11] : memref<1x128xf32, #tpu.memory_space<vmem>>, vector<1x128xf32>
    %26 = vector.broadcast %25 : vector<1x128xf32> to vector<128x128xf32>
    %27 = arith.mulf %24, %26 : vector<128x128xf32>
    %c0_12 = arith.constant 0 : index
    %c0_13 = arith.constant 0 : index
    %28 = vector.load %arg5[%c0_12, %c0_13] : memref<1x128xf32, #tpu.memory_space<vmem>>, vector<1x128xf32>
    %29 = vector.broadcast %28 : vector<1x128xf32> to vector<128x128xf32>
    %30 = arith.addf %27, %29 : vector<128x128xf32>
    %cst_14 = arith.constant 0.000000e+00 : f32
    %31 = vector.broadcast %cst_14 : f32 to vector<128x128xf32>
    %32 = arith.maximumf %30, %31 : vector<128x128xf32>
    %c0_15 = arith.constant 0 : index
    %c0_16 = arith.constant 0 : index
    %33 = vector.load %arg6[%c0_15, %c0_16] : memref<128x128xf32, #tpu.memory_space<vmem>>, vector<128x128xf32>
    tpu.vector_store %arg6[%c0_15, %c0_16], %32 {strides = array<i32>} : memref<128x128xf32, #tpu.memory_space<vmem>>, vector<128x128xf32>,
    return
  }
  func.func @transform_0(%arg0: i32) -> (i32, i32) {
    %c0_i32 = arith.constant 0 : i32
    %c0_i32_0 = arith.constant 0 : i32
    return %arg0, %c0_i32 : i32, i32
  }
  func.func @transform_1(%arg0: i32) -> (i32, i32) {
    %c0_i32 = arith.constant 0 : i32
    %c0_i32_0 = arith.constant 0 : i32
    %c0_i32_1 = arith.constant 0 : i32
    return %c0_i32, %c0_i32_0 : i32, i32
  }
  func.func @transform_2(%arg0: i32) -> (i32, i32) {
    %c0_i32 = arith.constant 0 : i32
    %c0_i32_0 = arith.constant 0 : i32
    %c0_i32_1 = arith.constant 0 : i32
    return %c0_i32, %c0_i32_0 : i32, i32
  }
  func.func @transform_3(%arg0: i32) -> (i32, i32) {
    %c0_i32 = arith.constant 0 : i32
    %c0_i32_0 = arith.constant 0 : i32
    %c0_i32_1 = arith.constant 0 : i32
    return %c0_i32, %c0_i32_0 : i32, i32
  }
  func.func @transform_4(%arg0: i32) -> (i32, i32) {
    %c0_i32 = arith.constant 0 : i32
    %c0_i32_0 = arith.constant 0 : i32
    %c0_i32_1 = arith.constant 0 : i32
    return %c0_i32, %c0_i32_0 : i32, i32
  }
  func.func @transform_5(%arg0: i32) -> (i32, i32) {
    %c0_i32 = arith.constant 0 : i32
    %c0_i32_0 = arith.constant 0 : i32
    return %arg0, %c0_i32 : i32, i32
  }
}

</mosaic_0001>

<llo_original>
// kernel: tpu_custom_call.1
$region0: #{tpu_custom_call.1}
  #allocation0 [shape = 'u32[]', space=smem, size = 0x4, offset = 0x4, fixed_abs, tag = 'smem constant byte address 0x4 - core index']
  #allocation1 [shape = 'u32[144,128]{1,0:T(1,128)}', space=vmem, size = 0x12000, scoped, tag = 'internal scratch']
  %s0 = inlined_call_operand.vmem [shape: f32[256,64], index: 0, kind: input, shape index: {}]
  %s1 = inlined_call_operand.vmem [shape: bf16[64,128], index: 1, kind: input, shape index: {}]
  %s2 = inlined_call_operand.vmem [shape: f32[1,128], index: 2, kind: input, shape index: {}]
  %s3 = inlined_call_operand.vmem [shape: f32[1,128], index: 3, kind: input, shape index: {}]
  %s4 = inlined_call_operand.vmem [shape: f32[1,128], index: 4, kind: input, shape index: {}]
  %s5 = inlined_call_operand.hbm [shape: f32[256,128], index: 5, kind: output, shape index: {}]
  %s6 = sld [smem:[#allocation0]]
  $region53: #{tpu_custom_call.1} parent=0
    _
  %s8 = ssub.s32 1, %s6
  %s9 = scalar_select 0, %s8, %s6
  $region1: #{tpu_custom_call.1} parent=0
    #allocation2 [shape = 'u8[131072]{0}', space=vmem, size = 0x20000, scoped, tag = 'output window, operand 0']
    #allocation3 [shape = 's32[2]{0}', space=sflag, size = 0x8, scoped, tag = 'scoped memory for tpu_custom_call.1']
    %10 = vsyncpa [#allocation3], 0
    %s11 = scalar_lea.sflag [#allocation3], 1
    %12 = vsyncpa %s11, 0
    loop: start=0, step=1, limit=4
    $region2: #{tpu_custom_call.1} parent=1 // loop_pre_header
      _
    $region3: #{tpu_custom_call.1} parent=1 // loop_header
      %s14 = sphi 0, %s18
      %p15 = scmp.ge.s32.totalorder %s14, 4
      %s24 = sphi 0, %s26
      %s27 = sphi 0, %s24
      %s28 = sphi 0, %s27
      %s44 = sphi 0, %s28
      %s48 = sphi 0, %s48
      %s50 = sphi 0, %s48
      %s51 = sphi 0, %s50
      %s65 = sphi 0, %s51
      %s69 = sphi 0, %s69
      %s71 = sphi 0, %s69
      %s72 = sphi 0, %s71
      %s86 = sphi 0, %s72
      %s90 = sphi 0, %s90
      %s92 = sphi 0, %s90
      %s93 = sphi 0, %s92
      %s107 = sphi 0, %s93
      %s111 = sphi 0, %s111
      %s113 = sphi 0, %s111
      %s114 = sphi 0, %s113
      %s128 = sphi 0, %s114
      %s134 = sphi 0, %s136
      %s137 = sphi 0, %s134
      %s138 = sphi 0, %s137
      %s154 = sphi 0, %s138
    $region4: #{tpu_custom_call.1} parent=1 // loop_header_branch
      %17 = sbr.rel (%p15) target = $region8
    $region5: #{tpu_custom_call.1} parent=1 // loop_body
      %s19 = ssub.s32 %s14, 1
      %s20 = ssub.s32 %s14, 2
      %s21 = sadd.s32 %s14, 1
      %s22 = ssub.s32 %s14, %s21
      %p23 = scmp.eq.s32.totalorder %s22, 0
      %s25 = sadd.s32 %s24, 1
      %s26 = scalar_select %p23, %s24, %s25
      %p29 = pneg %p23
      %p30 = scmp.eq.s32.totalorder %s14, 1
      %p31 = por %p29, %p30
      %p32 = scmp.ne.s32.totalorder %s24, %s27
      %p33 = scmp.eq.s32.totalorder %s14, 0
      %p34 = por %p32, %p33
      %p35 = scmp.ne.s32.totalorder %s24, %s27
      %p36 = scmp.eq.s32.totalorder %s19, 1
      %p37 = por %p35, %p36
      %p38 = scmp.ne.s32.totalorder %s27, %s28
      %p39 = scmp.eq.s32.totalorder %s19, 0
      %p40 = por %p38, %p39
      %p41 = scmp.ne.s32.totalorder %s27, %s28
      %p42 = scmp.eq.s32.totalorder %s20, 1
      %p43 = por %p41, %p42
      %p45 = scmp.ne.s32.totalorder %s28, %s44
      %p46 = scmp.eq.s32.totalorder %s20, 0
      %p47 = por %p45, %p46
      %s49 = sadd.s32 %s48, 1
      %p52 = scmp.eq.s32.totalorder %s14, 1
      %p53 = scmp.ne.s32.totalorder %s48, %s50
      %p54 = scmp.eq.s32.totalorder %s14, 0
      %p55 = por %p53, %p54
      %p56 = scmp.ne.s32.totalorder %s48, %s50
      %p57 = scmp.eq.s32.totalorder %s19, 1
      %p58 = por %p56, %p57
      %p59 = scmp.ne.s32.totalorder %s50, %s51
      %p60 = scmp.eq.s32.totalorder %s19, 0
      %p61 = por %p59, %p60
      %p62 = scmp.ne.s32.totalorder %s50, %s51
      %p63 = scmp.eq.s32.totalorder %s20, 1
      %p64 = por %p62, %p63
      %p66 = scmp.ne.s32.totalorder %s51, %s65
      %p67 = scmp.eq.s32.totalorder %s20, 0
      %p68 = por %p66, %p67
      %s70 = sadd.s32 %s69, 1
      %p73 = scmp.eq.s32.totalorder %s14, 1
      %p74 = scmp.ne.s32.totalorder %s69, %s71
      %p75 = scmp.eq.s32.totalorder %s14, 0
      %p76 = por %p74, %p75
      %p77 = scmp.ne.s32.totalorder %s69, %s71
      %p78 = scmp.eq.s32.totalorder %s19, 1
      %p79 = por %p77, %p78
      %p80 = scmp.ne.s32.totalorder %s71, %s72
      %p81 = scmp.eq.s32.totalorder %s19, 0
      %p82 = por %p80, %p81
      %p83 = scmp.ne.s32.totalorder %s71, %s72
      %p84 = scmp.eq.s32.totalorder %s20, 1
      %p85 = por %p83, %p84
      %p87 = scmp.ne.s32.totalorder %s72, %s86
      %p88 = scmp.eq.s32.totalorder %s20, 0
      %p89 = por %p87, %p88
      %s91 = sadd.s32 %s90, 1
      %p94 = scmp.eq.s32.totalorder %s14, 1
      %p95 = scmp.ne.s32.totalorder %s90, %s92
      %p96 = scmp.eq.s32.totalorder %s14, 0
      %p97 = por %p95, %p96
      %p98 = scmp.ne.s32.totalorder %s90, %s92
      %p99 = scmp.eq.s32.totalorder %s19, 1
      %p100 = por %p98, %p99
      %p101 = scmp.ne.s32.totalorder %s92, %s93
      %p102 = scmp.eq.s32.totalorder %s19, 0
      %p103 = por %p101, %p102
      %p104 = scmp.ne.s32.totalorder %s92, %s93
      %p105 = scmp.eq.s32.totalorder %s20, 1
      %p106 = por %p104, %p105
      %p108 = scmp.ne.s32.totalorder %s93, %s107
      %p109 = scmp.eq.s32.totalorder %s20, 0
      %p110 = por %p108, %p109
      %s112 = sadd.s32 %s111, 1
      %p115 = scmp.eq.s32.totalorder %s14, 1
      %p116 = scmp.ne.s32.totalorder %s111, %s113
      %p117 = scmp.eq.s32.totalorder %s14, 0
      %p118 = por %p116, %p117
      %p119 = scmp.ne.s32.totalorder %s111, %s113
      %p120 = scmp.eq.s32.totalorder %s19, 1
      %p121 = por %p119, %p120
      %p122 = scmp.ne.s32.totalorder %s113, %s114
      %p123 = scmp.eq.s32.totalorder %s19, 0
      %p124 = por %p122, %p123
      %p125 = scmp.ne.s32.totalorder %s113, %s114
      %p126 = scmp.eq.s32.totalorder %s20, 1
      %p127 = por %p125, %p126
      %p129 = scmp.ne.s32.totalorder %s114, %s128
      %p130 = scmp.eq.s32.totalorder %s20, 0
      %p131 = por %p129, %p130
      %s132 = ssub.s32 %s14, %s21
      %p133 = scmp.eq.s32.totalorder %s132, 0
      %s135 = sadd.s32 %s134, 1
      %s136 = scalar_select %p133, %s134, %s135
      %p139 = pneg %p133
      %p140 = scmp.eq.s32.totalorder %s14, 1
      %p141 = por %p139, %p140
      %p142 = scmp.ne.s32.totalorder %s134, %s137
      %p143 = scmp.eq.s32.totalorder %s14, 0
      %p144 = por %p142, %p143
      %p145 = scmp.ne.s32.totalorder %s134, %s137
      %p146 = scmp.eq.s32.totalorder %s19, 1
      %p147 = por %p145, %p146
      %p148 = scmp.ne.s32.totalorder %s137, %s138
      %p149 = scmp.eq.s32.totalorder %s19, 0
      %p150 = por %p148, %p149
      %p151 = scmp.ne.s32.totalorder %s137, %s138
      %p152 = scmp.eq.s32.totalorder %s20, 1
      %p153 = por %p151, %p152
      %p155 = scmp.ne.s32.totalorder %s138, %s154
      %p156 = scmp.eq.s32.totalorder %s20, 0
      %p157 = por %p155, %p156
      %p158 = scmp.le.s32.totalorder 1, %s14
      %p159 = scmp.lt.s32.totalorder %s14, 3
      %p160 = pnand %p158, %p159
      %p161 = pneg %p160
      // Predicated region
      $region9: #{tpu_custom_call.1} parent=5 // pred_check
        _
      $region10: #{tpu_custom_call.1} parent=5 // pred_check_branch
        %163 = sbr.rel (%p160) target = $region12
      $region11: #{tpu_custom_call.1} parent=5 // pred_region
        %s164 = ssub.s32 %s14, 1
        // Predicated region
        $region13: #{tpu_custom_call.1} parent=11 // pred_check
          %p165 = pneg %p61
        $region14: #{tpu_custom_call.1} parent=11 // pred_check_branch
          %167 = sbr.rel (%p165) target = $region16
        $region15: #{tpu_custom_call.1} parent=11 // pred_region
          _
        $region16: #{tpu_custom_call.1} parent=11 // pred_fallthru
          _
        // Predicated region
        $region17: #{tpu_custom_call.1} parent=11 // pred_check
          %p168 = pneg %p82
        $region18: #{tpu_custom_call.1} parent=11 // pred_check_branch
          %170 = sbr.rel (%p168) target = $region20
        $region19: #{tpu_custom_call.1} parent=11 // pred_region
          _
        $region20: #{tpu_custom_call.1} parent=11 // pred_fallthru
          _
        // Predicated region
        $region21: #{tpu_custom_call.1} parent=11 // pred_check
          %p171 = pneg %p103
        $region22: #{tpu_custom_call.1} parent=11 // pred_check_branch
          %173 = sbr.rel (%p171) target = $region24
        $region23: #{tpu_custom_call.1} parent=11 // pred_region
          _
        $region24: #{tpu_custom_call.1} parent=11 // pred_fallthru
          _
        // Predicated region
        $region25: #{tpu_custom_call.1} parent=11 // pred_check
          %p174 = pneg %p124
        $region26: #{tpu_custom_call.1} parent=11 // pred_check_branch
          %176 = sbr.rel (%p174) target = $region28
        $region27: #{tpu_custom_call.1} parent=11 // pred_region
          _
        $region28: #{tpu_custom_call.1} parent=11 // pred_fallthru
          _
      $region12: #{tpu_custom_call.1} parent=5 // pred_fallthru
        _
      %p177 = scmp.lt.s32.totalorder %s14, 2
      // Predicated region
      $region29: #{tpu_custom_call.1} parent=5 // pred_check
        %p178 = pneg %p177
      $region30: #{tpu_custom_call.1} parent=5 // pred_check_branch
        %180 = sbr.rel (%p178) target = $region32
      $region31: #{tpu_custom_call.1} parent=5 // pred_region
        // Predicated region
        $region33: #{tpu_custom_call.1} parent=31 // pred_check
          %p181 = pneg %p34
        $region34: #{tpu_custom_call.1} parent=31 // pred_check_branch
          %183 = sbr.rel (%p181) target = $region36
        $region35: #{tpu_custom_call.1} parent=31 // pred_region
          %s184 = smul.u32 16, %s14
          %p185 = scmp.lt.s32.totalorder %s184, 31
          %s186 = scalar_select %p185, %s184, 31
          %s187 = smul.addr %s186, 8
          %s188 = scalar_lea.vmem %s0, %s187
          %s189 = smul.u32 16, %s14
        $region36: #{tpu_custom_call.1} parent=31 // pred_fallthru
          _
      $region32: #{tpu_custom_call.1} parent=5 // pred_fallthru
        _
      %p190 = scmp.le.s32.totalorder 1, %s14
      %p191 = scmp.lt.s32.totalorder %s14, 3
      %p192 = pnand %p190, %p191
      %p193 = pneg %p192
      // Predicated region
      $region37: #{tpu_custom_call.1} parent=5 // pred_check
        _
      $region38: #{tpu_custom_call.1} parent=5 // pred_check_branch
        %195 = sbr.rel (%p192) target = $region40
      $region39: #{tpu_custom_call.1} parent=5 // pred_region
        %s196 = ssub.s32 %s14, 1
        %s197 = smul.u32 16, %s19
        %p198 = scmp.lt.s32.totalorder %s197, 31
        %s199 = scalar_select %p198, %s197, 31
        %s200 = smul.addr %s199, 8
        %s201 = scalar_lea.vmem %s0, %s200
        %p202 = pneg %p40
        %p203 = pneg %p37
        %p204 = pneg %p61
        %p205 = pneg %p58
        %p206 = pneg %p82
        %p207 = pneg %p79
        %p208 = pneg %p103
        %p209 = pneg %p100
        %p210 = pneg %p124
        %p211 = pneg %p121
        %p212 = pneg %p150
        %p213 = pneg %p147
        %s214 = sand.u32 %s137, 1
        %s215 = scalar_lea.sflag [#allocation3], %s214
        %s216 = sand.u32 %s137, 1
        %s217 = smul.addr %s216, 128
        %s218 = scalar_lea.vmem [#allocation2], %s217
        %s219 = smul.u32 16, %s19
        %p220 = scmp.lt.s32.totalorder %s219, 31
        %s221 = scalar_select %p220, %s219, 31
        %s222 = smul.addr %s221, 8
        %s223 = scalar_lea.vmem %s0, %s222
        %s224 = smul.u32 16, %s19
        %s225 = smul.u32 16, %s19
        %v227 = vld [vmem:[%s223] sm:$0xff]
        %v228 = vld [vmem:[%s223 + $0x8] sm:$0xff]
        %v229 = vld [vmem:[%s223 + $0x10] sm:$0xff]
        %v230 = vld [vmem:[%s223 + $0x18] sm:$0xff]
        %v231 = vld [vmem:[%s223 + $0x20] sm:$0xff]
        %v232 = vld [vmem:[%s223 + $0x28] sm:$0xff]
        %v233 = vld [vmem:[%s223 + $0x30] sm:$0xff]
        %v234 = vld [vmem:[%s223 + $0x38] sm:$0xff]
        %v235 = vld [vmem:[%s223 + $0x40] sm:$0xff]
        %v236 = vld [vmem:[%s223 + $0x48] sm:$0xff]
        %v237 = vld [vmem:[%s223 + $0x50] sm:$0xff]
        %v238 = vld [vmem:[%s223 + $0x58] sm:$0xff]
        %v239 = vld [vmem:[%s223 + $0x60] sm:$0xff]
        %v240 = vld [vmem:[%s223 + $0x68] sm:$0xff]
        %v241 = vld [vmem:[%s223 + $0x70] sm:$0xff]
        %v242 = vld [vmem:[%s223 + $0x78] sm:$0xff]
        %v243 = vpack.c.bf16 %v228, %v227
        %v244 = vpack.c.bf16 %v230, %v229
        %v245 = vpack.c.bf16 %v232, %v231
        %v246 = vpack.c.bf16 %v234, %v233
        %v247 = vpack.c.bf16 %v236, %v235
        %v248 = vpack.c.bf16 %v238, %v237
        %v249 = vpack.c.bf16 %v240, %v239
        %v250 = vpack.c.bf16 %v242, %v241
        %v251 = vld [vmem:[%s1] sm:$0xf]
        %v252 = vld [vmem:[%s1 + $0x4] sm:$0xf]
        %v253 = vld [vmem:[%s1 + $0x8] sm:$0xf]
        %v254 = vld [vmem:[%s1 + $0xc] sm:$0xf]
        %v255 = vld [vmem:[%s1 + $0x10] sm:$0xf]
        %v256 = vld [vmem:[%s1 + $0x14] sm:$0xf]
        %v257 = vld [vmem:[%s1 + $0x18] sm:$0xf]
        %v258 = vld [vmem:[%s1 + $0x1c] sm:$0xf]
        %v259 = vld [vmem:[%s2] sm:$0x1]
        %v261 = vlaneseq
        %v262 = vshrl.u32 %v261, 7
        %v263 = vsub.s32 0, %v262
        %v264 = vrot.slane %v259, %v263
        %v274 = vunpack.c.l.b16 %v251
        %v275 = vunpack.c.l.b16 %v252
        %v276 = vunpack.c.l.b16 %v253
        %v277 = vunpack.c.l.b16 %v254
        %v278 = vunpack.c.l.b16 %v255
        %v279 = vunpack.c.l.b16 %v256
        %v280 = vunpack.c.l.b16 %v257
        %v281 = vunpack.c.l.b16 %v258
        %v282 = vpack.c.b16 %v275, %v274
        %v283 = vpack.c.b16 %v277, %v276
        %v284 = vpack.c.b16 %v279, %v278
        %v285 = vpack.c.b16 %v281, %v280
        %vm290 = vcmask 523264
        %v292 = vsel %vm290, %v243, 0
        %v295 = vsel %vm290, %v244, 0
        %v298 = vsel %vm290, %v245, 0
        %v301 = vsel %vm290, %v246, 0
        %v304 = vsel %vm290, %v247, 0
        %v307 = vsel %vm290, %v248, 0
        %v310 = vsel %vm290, %v249, 0
        %v313 = vsel %vm290, %v250, 0
        %315 = vmatprep.subr.bf16.mxu0 0
        %316 = vmatpush1.bf16.msra.mxu0 %v282
        %317 = vmatprep.subr.bf16.mxu0 0
        %318 = vmatpush1.bf16.msra.mxu0 %v283
        %319 = vmatprep.subr.bf16.mxu0 0
        %320 = vmatpush1.bf16.msra.mxu0 %v284
        %321 = vmatprep.subr.bf16.mxu0 0
        %322 = vmatpush1.bf16.msra.mxu0 %v285
        %323 = vmatprep.subr.bf16.mxu0 0
        %324 = vmatpush1.bf16.msra.mxu0 0
        %325 = vmatprep.subr.bf16.mxu0 0
        %326 = vmatpush1.bf16.msra.mxu0 0
        %327 = vmatprep.subr.bf16.mxu0 0
        %328 = vmatpush1.bf16.msra.mxu0 0
        %329 = vmatprep.subr.bf16.mxu0 0
        %330 = vmatpush1.bf16.msra.mxu0 0
        %331 = vmatprep.subr.bf16.mxu0 0
        %332 = vmatpush1.bf16.msra.mxu0 0
        %333 = vmatprep.subr.bf16.mxu0 0
        %334 = vmatpush1.bf16.msra.mxu0 0
        %335 = vmatprep.subr.bf16.mxu0 0
        %336 = vmatpush1.bf16.msra.mxu0 0
        %337 = vmatprep.subr.bf16.mxu0 0
        %338 = vmatpush1.bf16.msra.mxu0 0
        %339 = vmatprep.subr.bf16.mxu0 0
        %340 = vmatpush1.bf16.msra.mxu0 0
        %341 = vmatprep.subr.bf16.mxu0 0
        %342 = vmatpush1.bf16.msra.mxu0 0
        %343 = vmatprep.subr.bf16.mxu0 0
        %344 = vmatpush1.bf16.msra.mxu0 0
        %345 = vmatprep.subr.bf16.mxu0 0
        %346 = vmatpush1.bf16.msra.mxu0 0
        %347 = vmatprep.mubr.bf16.mxu0 0
        %348 = vmatmul.mubr.bf16.gmra.mrb[0].mxu0 %v292
        %v349 = vpop.f32.mrb[0].mxu0
        %v350 = vadd.f32 %v264, %v349
        %v351 = vpop.f32.mrb[0].mxu0
        %v352 = vpop.f32.mrb[0].mxu0
        %v353 = vadd.f32 %v264, %v352
        %v354 = vpop.f32.mrb[0].mxu0
        %355 = vmatprep.mubr.bf16.mxu0 0
        %356 = vmatmul.mubr.bf16.gmra.mrb[0].mxu0 %v295
        %v357 = vpop.f32.mrb[0].mxu0
        %v358 = vadd.f32 %v264, %v357
        %v359 = vpop.f32.mrb[0].mxu0
        %v360 = vpop.f32.mrb[0].mxu0
        %v361 = vadd.f32 %v264, %v360
        %v362 = vpop.f32.mrb[0].mxu0
        %363 = vmatprep.mubr.bf16.mxu0 0
        %364 = vmatmul.mubr.bf16.gmra.mrb[0].mxu0 %v298
        %v365 = vpop.f32.mrb[0].mxu0
        %v366 = vadd.f32 %v264, %v365
        %v367 = vpop.f32.mrb[0].mxu0
        %v368 = vpop.f32.mrb[0].mxu0
        %v369 = vadd.f32 %v264, %v368
        %v370 = vpop.f32.mrb[0].mxu0
        %371 = vmatprep.mubr.bf16.mxu0 0
        %372 = vmatmul.mubr.bf16.gmra.mrb[0].mxu0 %v301
        %v373 = vpop.f32.mrb[0].mxu0
        %v374 = vadd.f32 %v264, %v373
        %v375 = vpop.f32.mrb[0].mxu0
        %v376 = vpop.f32.mrb[0].mxu0
        %v377 = vadd.f32 %v264, %v376
        %v378 = vpop.f32.mrb[0].mxu0
        %379 = vmatprep.mubr.bf16.mxu0 0
        %380 = vmatmul.mubr.bf16.gmra.mrb[0].mxu0 %v304
        %v381 = vpop.f32.mrb[0].mxu0
        %v382 = vadd.f32 %v264, %v381
        %v383 = vpop.f32.mrb[0].mxu0
        %v384 = vpop.f32.mrb[0].mxu0
        %v385 = vadd.f32 %v264, %v384
        %v386 = vpop.f32.mrb[0].mxu0
        %387 = vmatprep.mubr.bf16.mxu0 0
        %388 = vmatmul.mubr.bf16.gmra.mrb[0].mxu0 %v307
        %v389 = vpop.f32.mrb[0].mxu0
        %v390 = vadd.f32 %v264, %v389
        %v391 = vpop.f32.mrb[0].mxu0
        %v392 = vpop.f32.mrb[0].mxu0
        %v393 = vadd.f32 %v264, %v392
        %v394 = vpop.f32.mrb[0].mxu0
        %395 = vmatprep.mubr.bf16.mxu0 0
        %396 = vmatmul.mubr.bf16.gmra.mrb[0].mxu0 %v310
        %v397 = vpop.f32.mrb[0].mxu0
        %v398 = vadd.f32 %v264, %v397
        %v399 = vpop.f32.mrb[0].mxu0
        %v400 = vpop.f32.mrb[0].mxu0
        %v401 = vadd.f32 %v264, %v400
        %v402 = vpop.f32.mrb[0].mxu0
        %403 = vmatprep.mubr.bf16.mxu0 0
        %404 = vmatmul.mubr.bf16.gmra.mrb[0].mxu0 %v313
        %v405 = vpop.f32.mrb[0].mxu0
        %v406 = vadd.f32 %v264, %v405
        %v407 = vpop.f32.mrb[0].mxu0
        %v408 = vpop.f32.mrb[0].mxu0
        %v409 = vadd.f32 %v264, %v408
        %v410 = vpop.f32.mrb[0].mxu0
        %411 = vdwg.mxu0
        %412 = vadd.xlane.f32.xlu0 %v350
        %v413 = vpop.xlane.xlu0 %412
        %414 = vadd.xlane.f32.xlu0 %v353
        %v415 = vpop.xlane.xlu0 %414
        %416 = vadd.xlane.f32.xlu0 %v358
        %v417 = vpop.xlane.xlu0 %416
        %418 = vadd.xlane.f32.xlu0 %v361
        %v419 = vpop.xlane.xlu0 %418
        %420 = vadd.xlane.f32.xlu0 %v366
        %v421 = vpop.xlane.xlu0 %420
        %422 = vadd.xlane.f32.xlu0 %v369
        %v423 = vpop.xlane.xlu0 %422
        %424 = vadd.xlane.f32.xlu0 %v374
        %v425 = vpop.xlane.xlu0 %424
        %426 = vadd.xlane.f32.xlu0 %v377
        %v427 = vpop.xlane.xlu0 %426
        %428 = vadd.xlane.f32.xlu0 %v382
        %v429 = vpop.xlane.xlu0 %428
        %430 = vadd.xlane.f32.xlu0 %v385
        %v431 = vpop.xlane.xlu0 %430
        %432 = vadd.xlane.f32.xlu0 %v390
        %v433 = vpop.xlane.xlu0 %432
        %434 = vadd.xlane.f32.xlu0 %v393
        %v435 = vpop.xlane.xlu0 %434
        %436 = vadd.xlane.f32.xlu0 %v398
        %v437 = vpop.xlane.xlu0 %436
        %438 = vadd.xlane.f32.xlu0 %v401
        %v439 = vpop.xlane.xlu0 %438
        %440 = vadd.xlane.f32.xlu0 %v406
        %v441 = vpop.xlane.xlu0 %440
        %442 = vadd.xlane.f32.xlu0 %v409
        %v443 = vpop.xlane.xlu0 %442
        %v444 = vrcp.pop 128.0
        %v445 = vmul.f32 %v413, %v444
        %v446 = vmul.f32 %v415, %v444
        %v447 = vmul.f32 %v417, %v444
        %v448 = vmul.f32 %v419, %v444
        %v449 = vmul.f32 %v421, %v444
        %v450 = vmul.f32 %v423, %v444
        %v451 = vmul.f32 %v425, %v444
        %v452 = vmul.f32 %v427, %v444
        %v453 = vmul.f32 %v429, %v444
        %v454 = vmul.f32 %v431, %v444
        %v455 = vmul.f32 %v433, %v444
        %v456 = vmul.f32 %v435, %v444
        %v457 = vmul.f32 %v437, %v444
        %v458 = vmul.f32 %v439, %v444
        %v459 = vmul.f32 %v441, %v444
        %v460 = vmul.f32 %v443, %v444
        %v461 = vsub.f32 %v350, %v445
        %v462 = vsub.f32 %v353, %v446
        %v463 = vsub.f32 %v358, %v447
        %v464 = vsub.f32 %v361, %v448
        %v465 = vsub.f32 %v366, %v449
        %v466 = vsub.f32 %v369, %v450
        %v467 = vsub.f32 %v374, %v451
        %v468 = vsub.f32 %v377, %v452
        %v469 = vsub.f32 %v382, %v453
        %v470 = vsub.f32 %v385, %v454
        %v471 = vsub.f32 %v390, %v455
        %v472 = vsub.f32 %v393, %v456
        %v473 = vsub.f32 %v398, %v457
        %v474 = vsub.f32 %v401, %v458
        %v475 = vsub.f32 %v406, %v459
        %v476 = vsub.f32 %v409, %v460
        %v477 = vmul.f32 %v461, %v461
        %v478 = vmul.f32 %v462, %v462
        %v479 = vmul.f32 %v463, %v463
        %v480 = vmul.f32 %v464, %v464
        %v481 = vmul.f32 %v465, %v465
        %v482 = vmul.f32 %v466, %v466
        %v483 = vmul.f32 %v467, %v467
        %v484 = vmul.f32 %v468, %v468
        %v485 = vmul.f32 %v469, %v469
        %v486 = vmul.f32 %v470, %v470
        %v487 = vmul.f32 %v471, %v471
        %v488 = vmul.f32 %v472, %v472
        %v489 = vmul.f32 %v473, %v473
        %v490 = vmul.f32 %v474, %v474
        %v491 = vmul.f32 %v475, %v475
        %v492 = vmul.f32 %v476, %v476
        %493 = vadd.xlane.f32.xlu0 %v477
        %v494 = vpop.xlane.xlu0 %493
        %495 = vadd.xlane.f32.xlu0 %v478
        %v496 = vpop.xlane.xlu0 %495
        %497 = vadd.xlane.f32.xlu0 %v479
        %v498 = vpop.xlane.xlu0 %497
        %499 = vadd.xlane.f32.xlu0 %v480
        %v500 = vpop.xlane.xlu0 %499
        %501 = vadd.xlane.f32.xlu0 %v481
        %v502 = vpop.xlane.xlu0 %501
        %503 = vadd.xlane.f32.xlu0 %v482
        %v504 = vpop.xlane.xlu0 %503
        %505 = vadd.xlane.f32.xlu0 %v483
        %v506 = vpop.xlane.xlu0 %505
        %507 = vadd.xlane.f32.xlu0 %v484
        %v508 = vpop.xlane.xlu0 %507
        %509 = vadd.xlane.f32.xlu0 %v485
        %v510 = vpop.xlane.xlu0 %509
        %511 = vadd.xlane.f32.xlu0 %v486
        %v512 = vpop.xlane.xlu0 %511
        %513 = vadd.xlane.f32.xlu0 %v487
        %v514 = vpop.xlane.xlu0 %513
        %515 = vadd.xlane.f32.xlu0 %v488
        %v516 = vpop.xlane.xlu0 %515
        %517 = vadd.xlane.f32.xlu0 %v489
        %v518 = vpop.xlane.xlu0 %517
        %519 = vadd.xlane.f32.xlu0 %v490
        %v520 = vpop.xlane.xlu0 %519
        %521 = vadd.xlane.f32.xlu0 %v491
        %v522 = vpop.xlane.xlu0 %521
        %523 = vadd.xlane.f32.xlu0 %v492
        %v524 = vpop.xlane.xlu0 %523
        %v525 = vmul.f32 %v494, %v444
        %v526 = vmul.f32 %v496, %v444
        %v527 = vmul.f32 %v498, %v444
        %v528 = vmul.f32 %v500, %v444
        %v529 = vmul.f32 %v502, %v444
        %v530 = vmul.f32 %v504, %v444
        %v531 = vmul.f32 %v506, %v444
        %v532 = vmul.f32 %v508, %v444
        %v533 = vmul.f32 %v510, %v444
        %v534 = vmul.f32 %v512, %v444
        %v535 = vmul.f32 %v514, %v444
        %v536 = vmul.f32 %v516, %v444
        %v537 = vmul.f32 %v518, %v444
        %v538 = vmul.f32 %v520, %v444
        %v539 = vmul.f32 %v522, %v444
        %v540 = vmul.f32 %v524, %v444
        %v541 = vadd.f32 %v525, 1e-05
        %v542 = vadd.f32 %v526, 1e-05
        %v543 = vadd.f32 %v527, 1e-05
        %v544 = vadd.f32 %v528, 1e-05
        %v545 = vadd.f32 %v529, 1e-05
        %v546 = vadd.f32 %v530, 1e-05
        %v547 = vadd.f32 %v531, 1e-05
        %v548 = vadd.f32 %v532, 1e-05
        %v549 = vadd.f32 %v533, 1e-05
        %v550 = vadd.f32 %v534, 1e-05
        %v551 = vadd.f32 %v535, 1e-05
        %v552 = vadd.f32 %v536, 1e-05
        %v553 = vadd.f32 %v537, 1e-05
        %v554 = vadd.f32 %v538, 1e-05
        %v555 = vadd.f32 %v539, 1e-05
        %v556 = vadd.f32 %v540, 1e-05
        %v557 = vrsqrt.pop %v541
        %v558 = vrsqrt.pop %v542
        %v559 = vrsqrt.pop %v543
        %v560 = vrsqrt.pop %v544
        %v561 = vrsqrt.pop %v545
        %v562 = vrsqrt.pop %v546
        %v563 = vrsqrt.pop %v547
        %v564 = vrsqrt.pop %v548
        %v565 = vrsqrt.pop %v549
        %v566 = vrsqrt.pop %v550
        %v567 = vrsqrt.pop %v551
        %v568 = vrsqrt.pop %v552
        %v569 = vrsqrt.pop %v553
        %v570 = vrsqrt.pop %v554
        %v571 = vrsqrt.pop %v555
        %v572 = vrsqrt.pop %v556
        %v573 = vmul.f32 %v461, %v557
        %v574 = vmul.f32 %v462, %v558
        %v575 = vmul.f32 %v463, %v559
        %v576 = vmul.f32 %v464, %v560
        %v577 = vmul.f32 %v465, %v561
        %v578 = vmul.f32 %v466, %v562
        %v579 = vmul.f32 %v467, %v563
        %v580 = vmul.f32 %v468, %v564
        %v581 = vmul.f32 %v469, %v565
        %v582 = vmul.f32 %v470, %v566
        %v583 = vmul.f32 %v471, %v567
        %v584 = vmul.f32 %v472, %v568
        %v585 = vmul.f32 %v473, %v569
        %v586 = vmul.f32 %v474, %v570
        %v587 = vmul.f32 %v475, %v571
        %v588 = vmul.f32 %v476, %v572
        %v589 = vld [vmem:[%s3] sm:$0x1]
        %v591 = vlaneseq
        %v592 = vshrl.u32 %v591, 7
        %v593 = vsub.s32 0, %v592
        %v594 = vrot.slane %v589, %v593
        %v596 = vmul.f32 %v573, %v594
        %v597 = vmul.f32 %v574, %v594
        %v598 = vmul.f32 %v575, %v594
        %v599 = vmul.f32 %v576, %v594
        %v600 = vmul.f32 %v577, %v594
        %v601 = vmul.f32 %v578, %v594
        %v602 = vmul.f32 %v579, %v594
        %v603 = vmul.f32 %v580, %v594
        %v604 = vmul.f32 %v581, %v594
        %v605 = vmul.f32 %v582, %v594
        %v606 = vmul.f32 %v583, %v594
        %v607 = vmul.f32 %v584, %v594
        %v608 = vmul.f32 %v585, %v594
        %v609 = vmul.f32 %v586, %v594
        %v610 = vmul.f32 %v587, %v594
        %v611 = vmul.f32 %v588, %v594
        %v612 = vld [vmem:[%s4] sm:$0x1]
        %v614 = vlaneseq
        %v615 = vshrl.u32 %v614, 7
        %v616 = vsub.s32 0, %v615
        %v617 = vrot.slane %v612, %v616
        %v619 = vadd.f32 %v596, %v617
        %v620 = vadd.f32 %v597, %v617
        %v621 = vadd.f32 %v598, %v617
        %v622 = vadd.f32 %v599, %v617
        %v623 = vadd.f32 %v600, %v617
        %v624 = vadd.f32 %v601, %v617
        %v625 = vadd.f32 %v602, %v617
        %v626 = vadd.f32 %v603, %v617
        %v627 = vadd.f32 %v604, %v617
        %v628 = vadd.f32 %v605, %v617
        %v629 = vadd.f32 %v606, %v617
        %v630 = vadd.f32 %v607, %v617
        %v631 = vadd.f32 %v608, %v617
        %v632 = vadd.f32 %v609, %v617
        %v633 = vadd.f32 %v610, %v617
        %v634 = vadd.f32 %v611, %v617
        %v635 = vmax.f32 %v619, 0.0
        %v636 = vmax.f32 %v620, 0.0
        %v637 = vmax.f32 %v621, 0.0
        %v638 = vmax.f32 %v622, 0.0
        %v639 = vmax.f32 %v623, 0.0
        %v640 = vmax.f32 %v624, 0.0
        %v641 = vmax.f32 %v625, 0.0
        %v642 = vmax.f32 %v626, 0.0
        %v643 = vmax.f32 %v627, 0.0
        %v644 = vmax.f32 %v628, 0.0
        %v645 = vmax.f32 %v629, 0.0
        %v646 = vmax.f32 %v630, 0.0
        %v647 = vmax.f32 %v631, 0.0
        %v648 = vmax.f32 %v632, 0.0
        %v649 = vmax.f32 %v633, 0.0
        %v650 = vmax.f32 %v634, 0.0
        %651 = vst [vmem:[%s218] sm:$0xff] %v635
        %652 = vst [vmem:[%s218 + $0x8] sm:$0xff] %v636
        %653 = vst [vmem:[%s218 + $0x10] sm:$0xff] %v637
        %654 = vst [vmem:[%s218 + $0x18] sm:$0xff] %v638
        %655 = vst [vmem:[%s218 + $0x20] sm:$0xff] %v639
        %656 = vst [vmem:[%s218 + $0x28] sm:$0xff] %v640
        %657 = vst [vmem:[%s218 + $0x30] sm:$0xff] %v641
        %658 = vst [vmem:[%s218 + $0x38] sm:$0xff] %v642
        %659 = vst [vmem:[%s218 + $0x40] sm:$0xff] %v643
        %660 = vst [vmem:[%s218 + $0x48] sm:$0xff] %v644
        %661 = vst [vmem:[%s218 + $0x50] sm:$0xff] %v645
        %662 = vst [vmem:[%s218 + $0x58] sm:$0xff] %v646
        %663 = vst [vmem:[%s218 + $0x60] sm:$0xff] %v647
        %664 = vst [vmem:[%s218 + $0x68] sm:$0xff] %v648
        %665 = vst [vmem:[%s218 + $0x70] sm:$0xff] %v649
        %666 = vst [vmem:[%s218 + $0x78] sm:$0xff] %v650
        %s667 = sand.u32 %s137, 1
        %s668 = scalar_lea.sflag [#allocation3], %s667
        %s669 = sand.u32 %s137, 1
        %s670 = smul.addr %s669, 128
        %s671 = scalar_lea.vmem [#allocation2], %s670
        // Predicated region
        $region41: #{tpu_custom_call.1} parent=39 // pred_check
          %p672 = pneg %p147
        $region42: #{tpu_custom_call.1} parent=39 // pred_check_branch
          %674 = sbr.rel (%p672) target = $region44
        $region43: #{tpu_custom_call.1} parent=39 // pred_region
          %s675 = smul.u32 16, %s19
          %s677 = ssub.s32 2048, 2048
          %678 = vsyncadd %s668, %s677
          %s679 = smul.addr %s675, 128
          %s680 = scalar_lea.hbm %s5, %s679
          %s681 = sshll.u32 %s671, 4
          %s682 = int_to_ptr.vmem [resolvable:$true] %s681
          %687 = dma.vmem_to_hbm [thread:$0]  %s682, 2048, %s680, %s668, 128, 128, 8
        $region44: #{tpu_custom_call.1} parent=39 // pred_fallthru
          _
      $region40: #{tpu_custom_call.1} parent=5 // pred_fallthru
        _
      %p688 = scmp.le.s32.totalorder 2, %s14
      // Predicated region
      $region45: #{tpu_custom_call.1} parent=5 // pred_check
        %p689 = pneg %p688
      $region46: #{tpu_custom_call.1} parent=5 // pred_check_branch
        %691 = sbr.rel (%p689) target = $region48
      $region47: #{tpu_custom_call.1} parent=5 // pred_region
        %s692 = ssub.s32 %s14, 2
        // Predicated region
        $region49: #{tpu_custom_call.1} parent=47 // pred_check
          %p693 = pneg %p153
        $region50: #{tpu_custom_call.1} parent=47 // pred_check_branch
          %695 = sbr.rel (%p693) target = $region52
        $region51: #{tpu_custom_call.1} parent=47 // pred_region
          %s696 = sand.u32 %s138, 1
          %s697 = scalar_lea.sflag [#allocation3], %s696
          %s698 = sand.u32 %s138, 1
          %s699 = smul.addr %s698, 128
          %s700 = scalar_lea.vmem [#allocation2], %s699
          %701 = dma.done %s697, 2048
        $region52: #{tpu_custom_call.1} parent=47 // pred_fallthru
          _
      $region48: #{tpu_custom_call.1} parent=5 // pred_fallthru
        _
    $region6: #{tpu_custom_call.1} parent=1 // loop_footer
      %s18 = sadd.s32 1, %s14
    $region7: #{tpu_custom_call.1} parent=1 // loop_footer_branch
      %13 = sbr.rel target = $region3
    $region8: #{tpu_custom_call.1} parent=1 // loop_exit
      _
    %702 = vsyncpa [#allocation3], 1
    %s703 = scalar_lea.sflag [#allocation3], 1
    %704 = vsyncpa %s703, 1

</llo_original>
